<compile_context>
chip_gen: v7x
topology: tpu7x:2x2x1
jax: 0.10.0
libtpu: 0.0.40
codegen_flags: <defaults>
</compile_context>

<pallas_src>
import numpy as np
import jax
import jax.numpy as jnp
from jax.experimental import pallas as pl
from jax.experimental.pallas import tpu as pltpu


# ----------------------------- options (synthetic) ---------------------------
class Opt:
    fix_max_len = 16      # fixed token length per text (opt.fix_max_len)
    split_size = 4        # opt.split_size
    slide_size = 6        # opt.slide_size
    stride_size = 2       # opt.stride_size
    max_aspect_len = 8    # opt.max_aspect_len
    batch = True


def _pick_batch_block(B):
    # 256-row blocks keep the double-buffered per-step footprint at ~2-4 MiB
    # (under v5e's 16 MiB scoped-VMEM default and v7x's 32 MiB scoped / 64 MiB
    # physical) while giving the pipeline enough per-step work.  Small batches
    # run as one full-array block (legal: block dim == full array dim).
    return B if B <= 256 else 256


# ------------------------------- Pallas kernel --------------------------------
def _make_dtl_call(B, L, A_in, size, stride, n_windows, maxlen, max_aspect_len):
    """Fused windowed-text transform + aspect pad/truncate.

    Inputs : text  [B, L]    int32
             aspect[B, A_in] int32
    Outputs: text  [B, n_windows, maxlen] int32   (final shape, no wrapper slice)
             aspect[B, max_aspect_len]    int32
    Every output slot is written with exactly ONE store of a value assembled
    in registers (window slice ++ zeros); all window offsets are compile-time
    constants, so this is pure load/store data movement (no MXU, no gather).
    """
    a_cnt = min(A_in, max_aspect_len)

    def kernel(text_ref, aspect_ref, text_out_ref, aspect_out_ref):
        blk = text_ref.shape[0]

        # Window w covers tokens [w*stride, w*stride + size), clamped to the
        # sequence end, right-padded with 0 to maxlen (= size + 30) — matching
        # tokenizer.text_to_sequence right-padding semantics.
        # TODO(synk): if n_windows grows large (small stride at production L),
        # group windows sharing a 128-lane input tile into one roll + select
        # per output tile instead of one slice per window (XLU pressure).
        for w in range(n_windows):
            start = w * stride
            cnt = max(0, min(size, L - start))
            if cnt > 0:
                win = text_ref[:, start:start + cnt]
                if cnt < maxlen:
                    win = jnp.concatenate(
                        [win, jnp.zeros((blk, maxlen - cnt), jnp.int32)],
                        axis=1)
            else:
                win = jnp.zeros((blk, maxlen), jnp.int32)
            text_out_ref[:, w, :] = win          # one store per slot

        # Aspect pad / truncate to max_aspect_len — single store.
        if a_cnt >= max_aspect_len:
            asp = aspect_ref[:, :max_aspect_len]
        elif a_cnt > 0:
            asp = jnp.concatenate(
                [aspect_ref[:, :a_cnt],
                 jnp.zeros((blk, max_aspect_len - a_cnt), jnp.int32)],
                axis=1)
        else:
            asp = jnp.zeros((blk, max_aspect_len), jnp.int32)
        aspect_out_ref[...] = asp

    blk = _pick_batch_block(B)
    grid = (pl.cdiv(B, blk),)
    return pl.pallas_call(
        kernel,
        out_shape=(
            jax.ShapeDtypeStruct((B, n_windows, maxlen), jnp.int32),
            jax.ShapeDtypeStruct((B, max_aspect_len), jnp.int32),
        ),
        grid=grid,
        in_specs=[
            pl.BlockSpec((blk, L), lambda i: (i, 0)),
            pl.BlockSpec((blk, A_in), lambda i: (i, 0)),
        ],
        out_specs=(
            pl.BlockSpec((blk, n_windows, maxlen), lambda i: (i, 0, 0)),
            pl.BlockSpec((blk, max_aspect_len), lambda i: (i, 0)),
        ),
        compiler_params=pltpu.CompilerParams(
            # batch axis is independent -> shard across v7x's 2 TensorCores
            dimension_semantics=("parallel",)),
    )


# ------------------------------ DTLLayer (JAX) --------------------------------
class DTLLayerPallas:
    def __init__(self, opt):
        self.opt = opt
        L = opt.fix_max_len

        # splitting: n_slices = L // size + 1, stride == size, maxlen = size + 30
        s = opt.split_size
        self.split_maxlen = s + 30
        self.split_n = L // s + 1

        # sliding: n_windows = (L - size) // stride + 1, maxlen = size + 30
        w = opt.slide_size
        self.slide_maxlen = w + 30
        self.slide_n = (L - w) // opt.stride_size + 1

        self._call_cache = {}

    def _get_call(self, trans_method, B, A_in):
        # TODO(synk): for serving with varying batch sizes, bucket/pad B
        # host-side so a new B does not trigger a fresh Mosaic compile.
        key = (trans_method, B, A_in)
        if key not in self._call_cache:
            L = self.opt.fix_max_len
            if trans_method == "splitting":
                size, stride = self.opt.split_size, self.opt.split_size
                n, maxlen = self.split_n, self.split_maxlen
            else:  # "sliding"
                size, stride = self.opt.slide_size, self.opt.stride_size
                n, maxlen = self.slide_n, self.slide_maxlen
            self._call_cache[key] = _make_dtl_call(
                B, L, A_in, size, stride, n, maxlen, self.opt.max_aspect_len)
        return self._call_cache[key]

    def forward(self, text_tokens, aspect_tokens, trans_method):
        """
        :param text_tokens:   [B, fix_max_len] int32 token ids (post string
                              preprocessing + tokenization).
        :param aspect_tokens: [B, A_in] int32 aspect token ids (raw length).
        :param trans_method:  'splitting' | 'sliding' | 'filter'
        :return: (text_slices [B, n, maxlen] int32,
                  aspect [B, max_aspect_len] int32)
        """
        # TODO(synk): raw-string preprocessing / tokenizer.text_to_sequence and
        # the spacy-based 'filter' method are string ops with no Pallas
        # equivalent; inputs here are already token ids.  Output is int32;
        # cast to int64 on host if a downstream consumer truly requires it.
        assert text_tokens.shape[0] == aspect_tokens.shape[0]
        if trans_method == "filter":
            raise NotImplementedError(
                "'filter' needs spacy sentence parsing (string op)")
        if trans_method not in ("splitting", "sliding"):
            raise ValueError("The value of `trans_method` is not supported!")

        B = text_tokens.shape[0]
        A_in = aspect_tokens.shape[1]
        call = self._get_call(trans_method, B, A_in)
        text_slices, aspect = call(text_tokens, aspect_tokens)
        return text_slices, aspect


# ---------------------------------- main --------------------------------------
if __name__ == "__main__":
    opt = Opt()
    layer = DTLLayerPallas(opt)

    key = jax.random.PRNGKey(0)
    k1, k2 = jax.random.split(key)
    B = 2
    text_tokens = jax.random.randint(k1, (B, opt.fix_max_len), 1, 100, dtype=jnp.int32)
    aspect_tokens = jax.random.randint(k2, (B, 5), 1, 100, dtype=jnp.int32)

    # run both supported transform methods (fused text + aspect kernel each)
    split_out, aspect_out = layer.forward(text_tokens, aspect_tokens, "splitting")
    slide_out, aspect_out2 = layer.forward(text_tokens, aspect_tokens, "sliding")
    jax.block_until_ready((split_out, slide_out, aspect_out, aspect_out2))

    # numpy reference check (windowing + right-padding semantics)
    xt = np.asarray(text_tokens)
    ref_split = np.zeros((B, layer.split_n, layer.split_maxlen), np.int32)
    for w in range(layer.split_n):
        for j in range(opt.split_size):
            l = w * opt.split_size + j
            if l < opt.fix_max_len:
                ref_split[:, w, j] = xt[:, l]
    ref_slide = np.zeros((B, layer.slide_n, layer.slide_maxlen), np.int32)
    for w in range(layer.slide_n):
        for j in range(opt.slide_size):
            l = w * opt.stride_size + j
            if l < opt.fix_max_len:
                ref_slide[:, w, j] = xt[:, l]
    ref_aspect = np.zeros((B, opt.max_aspect_len), np.int32)
    ref_aspect[:, :5] = np.asarray(aspect_tokens)

    assert split_out.shape == (B, layer.split_n, layer.split_maxlen)
    assert slide_out.shape == (B, layer.slide_n, layer.slide_maxlen)
    assert aspect_out.shape == (B, opt.max_aspect_len)
    assert np.array_equal(np.asarray(split_out), ref_split)
    assert np.array_equal(np.asarray(slide_out), ref_slide)
    assert np.array_equal(np.asarray(aspect_out), ref_aspect)
    assert np.array_equal(np.asarray(aspect_out2), ref_aspect)

    print("KERNEL_OK")
</pallas_src>

<mosaic_0001>
module attributes {stable_mosaic.version = 11 : i64} {
  func.func @kernel(%arg0: i32, %arg1: memref<2x16xi32, #tpu.memory_space<vmem>>, %arg2: memref<2x5xi32, #tpu.memory_space<vmem>>, %arg3: memref<2x5x34xi32, #tpu.memory_space<vmem>>, %arg4: memref<2x8xi32, #tpu.memory_space<vmem>>) attributes {dimension_semantics = [#tpu.dimension_semantics<parallel>], iteration_bounds = array<i64: 1>, scalar_prefetch = 0 : i64, scratch_operands = 0 : i64, tpu.core_type = #tpu.core_type<tc>, window_params = [{transform_indices = @transform_0, window_bounds = array<i64: 2, 16>}, {transform_indices = @transform_1, window_bounds = array<i64: 2, 5>}, {transform_indices = @transform_2, window_bounds = array<i64: 2, 5, 34>}, {transform_indices = @transform_3, window_bounds = array<i64: 2, 8>}]} {
    %c0 = arith.constant 0 : index
    %c0_0 = arith.constant 0 : index
    %0 = vector.load %arg1[%c0, %c0_0] : memref<2x16xi32, #tpu.memory_space<vmem>>, vector<2x4xi32>
    %c0_i32 = arith.constant 0 : i32
    %1 = vector.broadcast %c0_i32 : i32 to vector<2x30xi32>
    %2 = tpu.concatenate %0, %1 in 1 : vector<2x4xi32>, vector<2x30xi32> -> vector<2x34xi32>
    %c0_1 = arith.constant 0 : index
    %c0_2 = arith.constant 0 : index
    %c0_3 = arith.constant 0 : index
    %3 = vector.load %arg3[%c0_1, %c0_2, %c0_3] : memref<2x5x34xi32, #tpu.memory_space<vmem>>, vector<2x1x34xi32>
    %4 = vector.shape_cast %3 : vector<2x1x34xi32> to vector<2x34xi32>
    %5 = vector.shape_cast %2 : vector<2x34xi32> to vector<2x1x34xi32>
    tpu.vector_store %arg3[%c0_1, %c0_2, %c0_3], %5 {strides = array<i32>} : memref<2x5x34xi32, #tpu.memory_space<vmem>>, vector<2x1x34xi32>,
    %c0_4 = arith.constant 0 : index
    %c4 = arith.constant 4 : index
    %6 = vector.load %arg1[%c0_4, %c4] : memref<2x16xi32, #tpu.memory_space<vmem>>, vector<2x4xi32>
    %c0_i32_5 = arith.constant 0 : i32
    %7 = vector.broadcast %c0_i32_5 : i32 to vector<2x30xi32>
    %8 = tpu.concatenate %6, %7 in 1 : vector<2x4xi32>, vector<2x30xi32> -> vector<2x34xi32>
    %c0_6 = arith.constant 0 : index
    %c1 = arith.constant 1 : index
    %c0_7 = arith.constant 0 : index
    %9 = vector.load %arg3[%c0_6, %c1, %c0_7] : memref<2x5x34xi32, #tpu.memory_space<vmem>>, vector<2x1x34xi32>
    %10 = vector.shape_cast %9 : vector<2x1x34xi32> to vector<2x34xi32>
    %11 = vector.shape_cast %8 : vector<2x34xi32> to vector<2x1x34xi32>
    tpu.vector_store %arg3[%c0_6, %c1, %c0_7], %11 {strides = array<i32>} : memref<2x5x34xi32, #tpu.memory_space<vmem>>, vector<2x1x34xi32>,
    %c0_8 = arith.constant 0 : index
    %c8 = arith.constant 8 : index
    %12 = vector.load %arg1[%c0_8, %c8] : memref<2x16xi32, #tpu.memory_space<vmem>>, vector<2x4xi32>
    %c0_i32_9 = arith.constant 0 : i32
    %13 = vector.broadcast %c0_i32_9 : i32 to vector<2x30xi32>
    %14 = tpu.concatenate %12, %13 in 1 : vector<2x4xi32>, vector<2x30xi32> -> vector<2x34xi32>
    %c0_10 = arith.constant 0 : index
    %c2 = arith.constant 2 : index
    %c0_11 = arith.constant 0 : index
    %15 = vector.load %arg3[%c0_10, %c2, %c0_11] : memref<2x5x34xi32, #tpu.memory_space<vmem>>, vector<2x1x34xi32>
    %16 = vector.shape_cast %15 : vector<2x1x34xi32> to vector<2x34xi32>
    %17 = vector.shape_cast %14 : vector<2x34xi32> to vector<2x1x34xi32>
    tpu.vector_store %arg3[%c0_10, %c2, %c0_11], %17 {strides = array<i32>} : memref<2x5x34xi32, #tpu.memory_space<vmem>>, vector<2x1x34xi32>,
    %c0_12 = arith.constant 0 : index
    %c12 = arith.constant 12 : index
    %18 = vector.load %arg1[%c0_12, %c12] : memref<2x16xi32, #tpu.memory_space<vmem>>, vector<2x4xi32>
    %c0_i32_13 = arith.constant 0 : i32
    %19 = vector.broadcast %c0_i32_13 : i32 to vector<2x30xi32>
    %20 = tpu.concatenate %18, %19 in 1 : vector<2x4xi32>, vector<2x30xi32> -> vector<2x34xi32>
    %c0_14 = arith.constant 0 : index
    %c3 = arith.constant 3 : index
    %c0_15 = arith.constant 0 : index
    %21 = vector.load %arg3[%c0_14, %c3, %c0_15] : memref<2x5x34xi32, #tpu.memory_space<vmem>>, vector<2x1x34xi32>
    %22 = vector.shape_cast %21 : vector<2x1x34xi32> to vector<2x34xi32>
    %23 = vector.shape_cast %20 : vector<2x34xi32> to vector<2x1x34xi32>
    tpu.vector_store %arg3[%c0_14, %c3, %c0_15], %23 {strides = array<i32>} : memref<2x5x34xi32, #tpu.memory_space<vmem>>, vector<2x1x34xi32>,
    %c0_i32_16 = arith.constant 0 : i32
    %24 = vector.broadcast %c0_i32_16 : i32 to vector<2x34xi32>
    %c0_17 = arith.constant 0 : index
    %c4_18 = arith.constant 4 : index
    %c0_19 = arith.constant 0 : index
    %25 = vector.load %arg3[%c0_17, %c4_18, %c0_19] : memref<2x5x34xi32, #tpu.memory_space<vmem>>, vector<2x1x34xi32>
    %26 = vector.shape_cast %25 : vector<2x1x34xi32> to vector<2x34xi32>
    %27 = vector.shape_cast %24 : vector<2x34xi32> to vector<2x1x34xi32>
    tpu.vector_store %arg3[%c0_17, %c4_18, %c0_19], %27 {strides = array<i32>} : memref<2x5x34xi32, #tpu.memory_space<vmem>>, vector<2x1x34xi32>,
    %c0_20 = arith.constant 0 : index
    %c0_21 = arith.constant 0 : index
    %28 = vector.load %arg2[%c0_20, %c0_21] : memref<2x5xi32, #tpu.memory_space<vmem>>, vector<2x5xi32>
    %c0_i32_22 = arith.constant 0 : i32
    %29 = vector.broadcast %c0_i32_22 : i32 to vector<2x3xi32>
    %30 = tpu.concatenate %28, %29 in 1 : vector<2x5xi32>, vector<2x3xi32> -> vector<2x8xi32>
    %c0_23 = arith.constant 0 : index
    %c0_24 = arith.constant 0 : index
    %31 = vector.load %arg4[%c0_23, %c0_24] : memref<2x8xi32, #tpu.memory_space<vmem>>, vector<2x8xi32>
    tpu.vector_store %arg4[%c0_23, %c0_24], %30 {strides = array<i32>} : memref<2x8xi32, #tpu.memory_space<vmem>>, vector<2x8xi32>,
    return
  }
  func.func @transform_0(%arg0: i32) -> (i32, i32) {
    %c0_i32 = arith.constant 0 : i32
    %c0_i32_0 = arith.constant 0 : i32
    return %arg0, %c0_i32 : i32, i32
  }
  func.func @transform_1(%arg0: i32) -> (i32, i32) {
    %c0_i32 = arith.constant 0 : i32
    %c0_i32_0 = arith.constant 0 : i32
    return %arg0, %c0_i32 : i32, i32
  }
  func.func @transform_2(%arg0: i32) -> (i32, i32, i32) {
    %c0_i32 = arith.constant 0 : i32
    %c0_i32_0 = arith.constant 0 : i32
    %c0_i32_1 = arith.constant 0 : i32
    return %arg0, %c0_i32, %c0_i32_0 : i32, i32, i32
  }
  func.func @transform_3(%arg0: i32) -> (i32, i32) {
    %c0_i32 = arith.constant 0 : i32
    %c0_i32_0 = arith.constant 0 : i32
    return %arg0, %c0_i32 : i32, i32
  }
}

</mosaic_0001>

<llo_original>
// kernel: tpu_custom_call.1
$region0: #{tpu_custom_call.1}
  #allocation0 [shape = 'u32[]', space=smem, size = 0x4, offset = 0x4, fixed_abs, tag = 'smem constant byte address 0x4 - core index']
  #allocation1 [shape = 'u32[144,128]{1,0:T(1,128)}', space=vmem, size = 0x12000, scoped, tag = 'internal scratch']
  %s0 = inlined_call_operand.hbm [shape: s32[2,16], index: 0, kind: input, shape index: {}]
  %s1 = inlined_call_operand.vmem [shape: s32[2,5], index: 1, kind: input, shape index: {}]
  %s2 = inlined_call_operand.vmem [shape: s32[2,5,34], index: 2, kind: output, shape index: {0}]
  %s3 = inlined_call_operand.hbm [shape: s32[2,8], index: 3, kind: output, shape index: {1}]
  %4 = xla_tuple %s2, %s3
  %s5 = sld [smem:[#allocation0]]
  $region30: #{tpu_custom_call.1} parent=0
    _
  %s7 = ssub.s32 1, %s5
  %s8 = scalar_select 0, %s7, %s5
  $region1: #{tpu_custom_call.1} parent=0
    #allocation2 [shape = 'u8[1024]{0}', space=vmem, size = 0x400, scoped, tag = 'input window, operand 0, single buffered']
    #allocation3 [shape = 's32[1]{0}', space=sflag, size = 0x4, scoped, tag = 'scoped memory for tpu_custom_call.1']
    #allocation4 [shape = 's32[1]{0}', space=sflag, size = 0x4, scoped, tag = 'scoped memory for tpu_custom_call.1']
    #allocation5 [shape = 'u8[1024]{0}', space=vmem, size = 0x400, scoped, tag = 'output window, operand 1, single buffered']
    %9 = vsyncpa [#allocation3], 0
    %10 = vsyncpa [#allocation4], 0
    // Predicated region
    $region2: #{tpu_custom_call.1} parent=1 // pred_check
      _
    $region3: #{tpu_custom_call.1} parent=1 // pred_check_branch
      %12 = sbr.rel (0) target = $region5
    $region4: #{tpu_custom_call.1} parent=1 // pred_region
      %s14 = ssub.s32 32, 32
      %15 = vsyncadd [#allocation3], %s14
      %s17 = sshll.u32 [#allocation2], 4
      %s18 = int_to_ptr.vmem [resolvable:$true] %s17
      %20 = dma.hbm_to_vmem [thread:$0]  %s0, 32, %s18, [#allocation3]
    $region5: #{tpu_custom_call.1} parent=1 // pred_fallthru
      _
    // Predicated region
    $region6: #{tpu_custom_call.1} parent=1 // pred_check
      _
    $region7: #{tpu_custom_call.1} parent=1 // pred_check_branch
      %22 = sbr.rel (0) target = $region9
    $region8: #{tpu_custom_call.1} parent=1 // pred_region
      _
    $region9: #{tpu_custom_call.1} parent=1 // pred_fallthru
      _
    // Predicated region
    $region10: #{tpu_custom_call.1} parent=1 // pred_check
      _
    $region11: #{tpu_custom_call.1} parent=1 // pred_check_branch
      %24 = sbr.rel (0) target = $region13
    $region12: #{tpu_custom_call.1} parent=1 // pred_region
      %25 = dma.done [#allocation3], 32
    $region13: #{tpu_custom_call.1} parent=1 // pred_fallthru
      _
    %v26 = vld [vmem:[#allocation2] sm:$0x3]
    %vm27 = vcmask 31744
    %v28 = vsel %vm27, %v26, 0
    %v30 = vunpack.c.l.s4 1966171168
    %v31 = vunpack.c.0.s8 %v30
    %v32 = vlaneseq
    %v33 = vshrl.u32 %v32, 7
    %v34 = vsub.s32 %v31, %v33
    %v35 = vrot.slane %v28, %v34
    %v36 = vcombine.high %v35, %v35
    %v38 = vunpack.c.l.s4 1966171168
    %v39 = vunpack.c.0.s8 %v38
    %v40 = vlaneseq
    %v41 = vshrl.u32 %v40, 7
    %v42 = vsub.s32 %v39, %v41
    %v43 = vrot.slane %v35, %v42
    %v45 = vunpack.c.l.s4 1966171168
    %v46 = vunpack.c.0.s8 %v45
    %v47 = vlaneseq
    %v48 = vshrl.u32 %v47, 7
    %v49 = vsub.s32 %v46, %v48
    %v50 = vrot.slane %v36, %v49
    %vm51 = vcmask 270336
    %52 = vst.msk [vmem:[%s2] sm:$0x1] %vm51, %v43
    %53 = vst.msk [vmem:[%s2 + $0x8] sm:$0x1] %vm51, %v50
    %v54 = vld [vmem:[#allocation2] sm:$0x3]
    %55 = vrot.lane.b32.xlu0 %v54, 124
    %v56 = vpop.permute.xlu0 %55
    %v57 = vsel %vm27, %v56, 0
    %v59 = vunpack.c.l.s4 1966171168
    %v60 = vunpack.c.0.s8 %v59
    %v61 = vlaneseq
    %v62 = vshrl.u32 %v61, 7
    %v63 = vsub.s32 %v60, %v62
    %v64 = vrot.slane %v57, %v63
    %v65 = vcombine.high %v64, %v64
    %v67 = vunpack.c.l.s4 1966171168
    %v68 = vunpack.c.0.s8 %v67
    %v69 = vlaneseq
    %v70 = vshrl.u32 %v69, 7
    %v71 = vsub.s32 %v68, %v70
    %v72 = vrot.slane %v64, %v71
    %v74 = vunpack.c.l.s4 1966171168
    %v75 = vunpack.c.0.s8 %v74
    %v76 = vlaneseq
    %v77 = vshrl.u32 %v76, 7
    %v78 = vsub.s32 %v75, %v77
    %v79 = vrot.slane %v65, %v78
    %80 = vst.msk [vmem:[%s2 + $0x1] sm:$0x1] %vm51, %v72
    %81 = vst.msk [vmem:[%s2 + $0x9] sm:$0x1] %vm51, %v79
    %v82 = vld [vmem:[#allocation2] sm:$0x3]
    %83 = vrot.lane.b32.xlu0 %v82, 120
    %v84 = vpop.permute.xlu0 %83
    %v85 = vsel %vm27, %v84, 0
    %v87 = vunpack.c.l.s4 1966171168
    %v88 = vunpack.c.0.s8 %v87
    %v89 = vlaneseq
    %v90 = vshrl.u32 %v89, 7
    %v91 = vsub.s32 %v88, %v90
    %v92 = vrot.slane %v85, %v91
    %v93 = vcombine.high %v92, %v92
    %v95 = vunpack.c.l.s4 1966171168
    %v96 = vunpack.c.0.s8 %v95
    %v97 = vlaneseq
    %v98 = vshrl.u32 %v97, 7
    %v99 = vsub.s32 %v96, %v98
    %v100 = vrot.slane %v92, %v99
    %v102 = vunpack.c.l.s4 1966171168
    %v103 = vunpack.c.0.s8 %v102
    %v104 = vlaneseq
    %v105 = vshrl.u32 %v104, 7
    %v106 = vsub.s32 %v103, %v105
    %v107 = vrot.slane %v93, %v106
    %108 = vst.msk [vmem:[%s2 + $0x2] sm:$0x1] %vm51, %v100
    %109 = vst.msk [vmem:[%s2 + $0xa] sm:$0x1] %vm51, %v107
    %v110 = vld [vmem:[#allocation2] sm:$0x3]
    %111 = vrot.lane.b32.xlu0 %v110, 116
    %v112 = vpop.permute.xlu0 %111
    %v113 = vsel %vm27, %v112, 0
    %v115 = vunpack.c.l.s4 1966171168
    %v116 = vunpack.c.0.s8 %v115
    %v117 = vlaneseq
    %v118 = vshrl.u32 %v117, 7
    %v119 = vsub.s32 %v116, %v118
    %v120 = vrot.slane %v113, %v119
    %v121 = vcombine.high %v120, %v120
    %v123 = vunpack.c.l.s4 1966171168
    %v124 = vunpack.c.0.s8 %v123
    %v125 = vlaneseq
    %v126 = vshrl.u32 %v125, 7
    %v127 = vsub.s32 %v124, %v126
    %v128 = vrot.slane %v120, %v127
    %v130 = vunpack.c.l.s4 1966171168
    %v131 = vunpack.c.0.s8 %v130
    %v132 = vlaneseq
    %v133 = vshrl.u32 %v132, 7
    %v134 = vsub.s32 %v131, %v133
    %v135 = vrot.slane %v121, %v134
    %136 = vst.msk [vmem:[%s2 + $0x3] sm:$0x1] %vm51, %v128
    %137 = vst.msk [vmem:[%s2 + $0xb] sm:$0x1] %vm51, %v135
    %138 = vst.msk [vmem:[%s2 + $0x4] sm:$0x1] %vm51, 0
    %139 = vst.msk [vmem:[%s2 + $0xc] sm:$0x1] %vm51, 0
    %v140 = vld [vmem:[%s1] sm:$0x3]
    %vm141 = vcmask 39936
    %v142 = vsel %vm141, %v140, 0
    %vm143 = vcmask 58368
    %144 = vst.msk [vmem:[#allocation5] sm:$0x3] %vm143, %v142
    // Predicated region
    $region14: #{tpu_custom_call.1} parent=1 // pred_check
      _
    $region15: #{tpu_custom_call.1} parent=1 // pred_check_branch
      %146 = sbr.rel (0) target = $region17
    $region16: #{tpu_custom_call.1} parent=1 // pred_region
      _
    $region17: #{tpu_custom_call.1} parent=1 // pred_fallthru
      _
    // Predicated region
    $region18: #{tpu_custom_call.1} parent=1 // pred_check
      _
    $region19: #{tpu_custom_call.1} parent=1 // pred_check_branch
      %148 = sbr.rel (0) target = $region21
    $region20: #{tpu_custom_call.1} parent=1 // pred_region
      %s150 = ssub.s32 32, 32
      %151 = vsyncadd [#allocation4], %s150
      %s153 = sshll.u32 [#allocation5], 4
      %s154 = int_to_ptr.vmem [resolvable:$true] %s153
      %156 = dma.vmem_to_hbm [thread:$0]  %s154, 32, %s3, [#allocation4]
    $region21: #{tpu_custom_call.1} parent=1 // pred_fallthru
      _
    // Predicated region
    $region22: #{tpu_custom_call.1} parent=1 // pred_check
      _
    $region23: #{tpu_custom_call.1} parent=1 // pred_check_branch
      %158 = sbr.rel (0) target = $region25
    $region24: #{tpu_custom_call.1} parent=1 // pred_region
      _
    $region25: #{tpu_custom_call.1} parent=1 // pred_fallthru
      _
    // Predicated region
    $region26: #{tpu_custom_call.1} parent=1 // pred_check
      _
    $region27: #{tpu_custom_call.1} parent=1 // pred_check_branch
      %160 = sbr.rel (0) target = $region29
    $region28: #{tpu_custom_call.1} parent=1 // pred_region
      %161 = dma.done [#allocation4], 32
    $region29: #{tpu_custom_call.1} parent=1 // pred_fallthru
      _
    %162 = vsyncpa [#allocation3], 1
    %163 = vsyncpa [#allocation4], 1

</llo_original>
